<compile_context>
chip_gen: v7x
topology: tpu7x:2x2x1
jax: 0.10.0
libtpu: 0.0.40
codegen_flags: <defaults>
</compile_context>

<pallas_src>
import functools
import math

import jax
import jax.numpy as jnp
from jax.experimental import pallas as pl
from jax.experimental.pallas import tpu as pltpu


# ----------------------------------------------------------------------------
# tiling / VMEM helpers
# ----------------------------------------------------------------------------

def _round_up(x, m):
    return (x + m - 1) // m * m


def _pick_tile(dim, pref, quantum, min_blocks=1):
    """Choose (tile, padded_dim).

    The tile is either the full (unpadded) dim -- always a legal block size --
    or a multiple of `quantum`, and padded_dim % tile == 0.  Dims larger than
    `pref` are never taken as a single full-dim block (v7x 64 MiB VMEM safety);
    they are padded up to a tile multiple instead."""
    if dim <= pref:
        if min_blocks > 1 and dim >= min_blocks * quantum:
            t = _round_up(-(-dim // min_blocks), quantum)
            return t, _round_up(dim, t)
        return dim, dim
    t = max(quantum, (pref // quantum) * quantum)
    return t, _round_up(dim, t)


def _device_vmem_bytes():
    try:
        cap = pltpu.get_tpu_info().vmem_capacity_bytes
        if cap:
            return int(cap)
    except Exception:
        pass
    return 64 * 1024 * 1024          # conservative default (v7x per-TensorCore)


def _vmem_limit(footprint_bytes):
    # actual double-buffered footprint * 2x headroom, clamped to ~75% of the
    # physical per-core VMEM (never request 128 MiB on a 64 MiB chip).
    cap = int(0.75 * _device_vmem_bytes())
    return int(max(4 << 20, min(cap, 2 * int(footprint_bytes))))


def _pad2(x, rows, cols):
    r, c = x.shape[-2], x.shape[-1]
    if r == rows and c == cols:
        return x
    pads = [(0, 0)] * (x.ndim - 2) + [(0, rows - r), (0, cols - c)]
    return jnp.pad(x, pads)


def _bf16(x):
    return x if x.dtype == jnp.bfloat16 else x.astype(jnp.bfloat16)


# ----------------------------------------------------------------------------
# generic matmul kernels (bf16 MXU, f32 accumulation, fused epilogue)
# ----------------------------------------------------------------------------

def _mm_kernel_k1(a_ref, b_ref, bias_ref, o_ref, *, scale, epilogue):
    """Single-K-step matmul: no accumulator scratch, direct writeback."""
    r = jnp.dot(a_ref[...], b_ref[...], preferred_element_type=jnp.float32)
    r = r * scale + bias_ref[...]
    if epilogue is not None:
        cols = (jax.lax.broadcasted_iota(jnp.int32, r.shape, 1)
                + pl.program_id(1) * o_ref.shape[1])
        r = epilogue(r, cols)
    o_ref[...] = r.astype(o_ref.dtype)


def _mm_kernel_acc(a_ref, b_ref, bias_ref, o_ref, acc_ref, *, scale, epilogue):
    """K-tiled fallback with f32 VMEM accumulator."""
    @pl.when(pl.program_id(2) == 0)
    def _init():
        acc_ref[...] = jnp.zeros_like(acc_ref)

    acc_ref[...] += jnp.dot(a_ref[...], b_ref[...],
                            preferred_element_type=jnp.float32)

    @pl.when(pl.program_id(2) == pl.num_programs(2) - 1)
    def _done():
        r = acc_ref[...] * scale + bias_ref[...]
        if epilogue is not None:
            cols = (jax.lax.broadcasted_iota(jnp.int32, r.shape, 1)
                    + pl.program_id(1) * o_ref.shape[1])
            r = epilogue(r, cols)
        o_ref[...] = r.astype(o_ref.dtype)


def pallas_matmul(a, b, bias=None, *, scale=1.0, epilogue=None,
                  out_dtype=jnp.float32, tm_pref=256, tn_pref=512, tk_pref=512):
    """out = epi(scale * (a @ b) + bias), tiled + pipelined on the MXU."""
    M, K = a.shape
    K2, N = b.shape
    assert K == K2
    tm, Mp = _pick_tile(M, tm_pref, 8, min_blocks=2)    # >=2 M blocks for v7x
    tn, Np = _pick_tile(N, tn_pref, 128)
    tk, Kp = _pick_tile(K, tk_pref, 128)
    a16 = _pad2(_bf16(a), Mp, Kp)
    b16 = _pad2(_bf16(b), Kp, Np)
    if bias is None:
        bias = jnp.zeros((N,), jnp.float32)
    bias2 = _pad2(bias.reshape(1, N).astype(jnp.float32), 1, Np)

    kt = Kp // tk
    out_bytes = jnp.dtype(out_dtype).itemsize
    fp = (2 * tm * tk * 2 + 2 * tk * tn * 2 + 2 * tn * 4
          + 2 * tm * tn * out_bytes + (tm * tn * 4 if kt > 1 else 0))

    if kt == 1:
        kernel = functools.partial(_mm_kernel_k1, scale=float(scale),
                                   epilogue=epilogue)
        grid = (Mp // tm, Np // tn)
        in_specs = [pl.BlockSpec((tm, Kp), lambda i, j: (i, 0)),
                    pl.BlockSpec((Kp, tn), lambda i, j: (0, j)),
                    pl.BlockSpec((1, tn), lambda i, j: (0, j))]
        out_specs = pl.BlockSpec((tm, tn), lambda i, j: (i, j))
        scratch = []
        sem = ("parallel", "parallel")
    else:
        kernel = functools.partial(_mm_kernel_acc, scale=float(scale),
                                   epilogue=epilogue)
        grid = (Mp // tm, Np // tn, kt)
        in_specs = [pl.BlockSpec((tm, tk), lambda i, j, k: (i, k)),
                    pl.BlockSpec((tk, tn), lambda i, j, k: (k, j)),
                    pl.BlockSpec((1, tn), lambda i, j, k: (0, j))]
        out_specs = pl.BlockSpec((tm, tn), lambda i, j, k: (i, j))
        scratch = [pltpu.VMEM((tm, tn), jnp.float32)]
        sem = ("parallel", "parallel", "arbitrary")

    out = pl.pallas_call(
        kernel,
        out_shape=jax.ShapeDtypeStruct((Mp, Np), out_dtype),
        grid_spec=pltpu.PrefetchScalarGridSpec(
            num_scalar_prefetch=0, grid=grid,
            in_specs=in_specs, out_specs=out_specs, scratch_shapes=scratch),
        compiler_params=pltpu.CompilerParams(
            dimension_semantics=sem, vmem_limit_bytes=_vmem_limit(fp)),
    )(a16, b16, bias2)
    if (Mp, Np) != (M, N):
        out = out[:M, :N]
    return out


# ----------------------------------------------------------------------------
# batched all-pairs correlation (no HBM transpose of the second fmap)
# ----------------------------------------------------------------------------

def _corr_kernel_k1(a_ref, b_ref, o_ref, *, scale):
    # a_ref: [1, tm, K], b_ref: [1, tn, K] -- contract the shared last dim;
    # the in-tile transpose rides the XLU while the kernel is MXU/DMA bound.
    r = jax.lax.dot_general(a_ref[0], b_ref[0],
                            dimension_numbers=(((1,), (1,)), ((), ())),
                            preferred_element_type=jnp.float32)
    o_ref[0] = (r * scale).astype(o_ref.dtype)


def _corr_kernel_acc(a_ref, b_ref, o_ref, acc_ref, *, scale):
    @pl.when(pl.program_id(3) == 0)
    def _init():
        acc_ref[...] = jnp.zeros_like(acc_ref)

    acc_ref[...] += jax.lax.dot_general(
        a_ref[0], b_ref[0], dimension_numbers=(((1,), (1,)), ((), ())),
        preferred_element_type=jnp.float32)

    @pl.when(pl.program_id(3) == pl.num_programs(3) - 1)
    def _done():
        o_ref[0] = (acc_ref[...] * scale).astype(o_ref.dtype)


def pallas_corr(a, b, *, scale=1.0, out_dtype=jnp.bfloat16,
                tm_pref=256, tn_pref=512, tk_pref=512):
    """out[p] = scale * a[p] @ b[p].T with b consumed row-major ([P, N, K])."""
    P, M, K = a.shape
    P2, N, K2 = b.shape
    assert P == P2 and K == K2
    tm, Mp = _pick_tile(M, tm_pref, 8)
    tn, Np = _pick_tile(N, tn_pref, 128)
    tk, Kp = _pick_tile(K, tk_pref, 128)
    a16 = _pad2(_bf16(a), Mp, Kp)
    b16 = _pad2(_bf16(b), Np, Kp)

    kt = Kp // tk
    out_bytes = jnp.dtype(out_dtype).itemsize
    fp = (2 * tm * tk * 2 + 2 * tn * tk * 2 + 2 * tm * tn * out_bytes
          + (tm * tn * 4 if kt > 1 else 0))

    if kt == 1:
        kernel = functools.partial(_corr_kernel_k1, scale=float(scale))
        grid = (P, Mp // tm, Np // tn)
        in_specs = [pl.BlockSpec((1, tm, Kp), lambda p, i, j: (p, i, 0)),
                    pl.BlockSpec((1, tn, Kp), lambda p, i, j: (p, j, 0))]
        out_specs = pl.BlockSpec((1, tm, tn), lambda p, i, j: (p, i, j))
        scratch = []
        sem = ("parallel", "parallel", "parallel")
    else:
        kernel = functools.partial(_corr_kernel_acc, scale=float(scale))
        grid = (P, Mp // tm, Np // tn, kt)
        in_specs = [pl.BlockSpec((1, tm, tk), lambda p, i, j, k: (p, i, k)),
                    pl.BlockSpec((1, tn, tk), lambda p, i, j, k: (p, j, k))]
        out_specs = pl.BlockSpec((1, tm, tn), lambda p, i, j, k: (p, i, j))
        scratch = [pltpu.VMEM((tm, tn), jnp.float32)]
        sem = ("parallel", "parallel", "parallel", "arbitrary")

    out = pl.pallas_call(
        kernel,
        out_shape=jax.ShapeDtypeStruct((P, Mp, Np), out_dtype),
        grid_spec=pltpu.PrefetchScalarGridSpec(
            num_scalar_prefetch=0, grid=grid,
            in_specs=in_specs, out_specs=out_specs, scratch_shapes=scratch),
        compiler_params=pltpu.CompilerParams(
            dimension_semantics=sem, vmem_limit_bytes=_vmem_limit(fp)),
    )(a16, b16)
    if (Mp, Np) != (M, N):
        out = out[:, :M, :N]
    return out


# ----------------------------------------------------------------------------
# fused update head: 4 inputs (no HBM concat), 3 lane-dense outputs
# ----------------------------------------------------------------------------

def _update_kernel(net_ref, inp_ref, cor_ref, flo_ref,
                   wn_ref, wi_ref, wc_ref, wf_ref, bias_ref,
                   omask_ref, onet_ref, odelta_ref, *, hdim, rr9):
    acc = jnp.dot(net_ref[...], wn_ref[...], preferred_element_type=jnp.float32)
    acc += jnp.dot(inp_ref[...], wi_ref[...], preferred_element_type=jnp.float32)
    acc += jnp.dot(cor_ref[...], wc_ref[...], preferred_element_type=jnp.float32)
    # K=2 flow segment: cheap f32 VPU outer products instead of a degenerate dot
    flo = flo_ref[...]                     # [tm, 2] f32
    wf = wf_ref[...]                       # [2, Nout] f32
    acc += flo[:, 0:1] * wf[0:1, :] + flo[:, 1:2] * wf[1:2, :]
    acc += bias_ref[...]
    # column layout [mask(rr9) | net(hdim) | delta(2) | pad]; activations fused.
    omask_ref[...] = (0.25 * acc[:, :rr9]).astype(omask_ref.dtype)
    onet_ref[...] = jnp.tanh(acc[:, rr9:rr9 + hdim]).astype(onet_ref.dtype)
    odelta_ref[...] = (0.1 * acc[:, rr9 + hdim:rr9 + hdim + 2]
                       ).astype(odelta_ref.dtype)


def pallas_update(nets, inps, corrs, flows, w_net, w_inp, w_cor, w_flo, bias,
                  *, hdim, rr9, tm_pref=256):
    # TODO(synk): real SKUpdateBlock (GRU + motion encoder + flow/mask heads)
    # is an external module; this stand-in is one fused matmul head.
    M = nets.shape[0]
    Kn, Nout = w_net.shape
    Ki, Kc, Kf = w_inp.shape[0], w_cor.shape[0], w_flo.shape[0]
    tm, Mp = _pick_tile(M, tm_pref, 8, min_blocks=2)

    def padr(x):
        return x if x.shape[0] == Mp else jnp.pad(x, ((0, Mp - M), (0, 0)))

    nets16 = padr(_bf16(nets))
    inps16 = padr(_bf16(inps))
    corrs16 = padr(_bf16(corrs))
    flows32 = padr(flows.astype(jnp.float32))
    bias2 = bias.reshape(1, Nout).astype(jnp.float32)

    fp = (2 * tm * (Kn + Ki + Kc) * 2 + 2 * tm * Kf * 4
          + 2 * (Kn + Ki + Kc) * Nout * 2 + 2 * Kf * Nout * 4 + 2 * Nout * 4
          + 2 * tm * (rr9 * 2 + hdim * 2 + 2 * 4))

    kernel = functools.partial(_update_kernel, hdim=hdim, rr9=rr9)
    omask, onet, odelta = pl.pallas_call(
        kernel,
        out_shape=(jax.ShapeDtypeStruct((Mp, rr9), jnp.bfloat16),
                   jax.ShapeDtypeStruct((Mp, hdim), jnp.bfloat16),
                   jax.ShapeDtypeStruct((Mp, 2), jnp.float32)),
        grid_spec=pltpu.PrefetchScalarGridSpec(
            num_scalar_prefetch=0, grid=(Mp // tm,),
            in_specs=[pl.BlockSpec((tm, Kn), lambda i: (i, 0)),
                      pl.BlockSpec((tm, Ki), lambda i: (i, 0)),
                      pl.BlockSpec((tm, Kc), lambda i: (i, 0)),
                      pl.BlockSpec((tm, Kf), lambda i: (i, 0)),
                      pl.BlockSpec((Kn, Nout), lambda i: (0, 0)),
                      pl.BlockSpec((Ki, Nout), lambda i: (0, 0)),
                      pl.BlockSpec((Kc, Nout), lambda i: (0, 0)),
                      pl.BlockSpec((Kf, Nout), lambda i: (0, 0)),
                      pl.BlockSpec((1, Nout), lambda i: (0, 0))],
            out_specs=(pl.BlockSpec((tm, rr9), lambda i: (i, 0)),
                       pl.BlockSpec((tm, hdim), lambda i: (i, 0)),
                       pl.BlockSpec((tm, 2), lambda i: (i, 0)))),
        compiler_params=pltpu.CompilerParams(
            dimension_semantics=("parallel",),
            vmem_limit_bytes=_vmem_limit(fp)),
    )(nets16, inps16, corrs16, flows32,
      _bf16(w_net), _bf16(w_inp), _bf16(w_cor), w_flo.astype(jnp.float32), bias2)
    if Mp != M:
        omask, onet, odelta = omask[:M], onet[:M], odelta[:M]
    return omask, onet, odelta


# ----------------------------------------------------------------------------
# convex upsampling kernel (softmax over 9 taps, EUP exp + approx reciprocal)
# ----------------------------------------------------------------------------

def _upsample_kernel(mask_ref, flow9_ref, out_ref):
    m = mask_ref[0].astype(jnp.float32)       # [9, rr, t]
    f = flow9_ref[0]                          # [2, 9, t] f32
    m = m - jnp.max(m, axis=0, keepdims=True)
    e = jnp.exp(m)                                                      # EUP
    inv = pl.reciprocal(jnp.sum(e, axis=0, keepdims=True), approx=True)  # EUP
    sm = e * inv                              # softmax over the 9 taps
    acc = sm[0][None] * f[:, 0][:, None, :]
    for j in range(1, 9):                     # static unrolled weighted sum (VPU)
        acc = acc + sm[j][None] * f[:, j][:, None, :]
    out_ref[0] = acc


def pallas_upsample(mask, flow9):
    """out[n,c,rr,p] = sum_j softmax_j(mask)[n,j,rr,p] * flow9[n,c,j,p]."""
    N, nine, rr, HW = mask.shape
    assert nine == 9
    t_hw, HWp = _pick_tile(HW, 512, 128)
    if HWp != HW:
        mask = jnp.pad(mask, ((0, 0), (0, 0), (0, 0), (0, HWp - HW)))
        flow9 = jnp.pad(flow9, ((0, 0), (0, 0), (0, 0), (0, HWp - HW)))
    fp = 2 * (9 * rr * t_hw * 2 + 2 * 9 * t_hw * 4 + 2 * rr * t_hw * 4)
    out = pl.pallas_call(
        _upsample_kernel,
        out_shape=jax.ShapeDtypeStruct((N, 2, rr, HWp), jnp.float32),
        grid=(N, HWp // t_hw),
        in_specs=[pl.BlockSpec((1, 9, rr, t_hw), lambda n, p: (n, 0, 0, p)),
                  pl.BlockSpec((1, 2, 9, t_hw), lambda n, p: (n, 0, 0, p))],
        out_specs=pl.BlockSpec((1, 2, rr, t_hw), lambda n, p: (n, 0, 0, p)),
        compiler_params=pltpu.CompilerParams(
            dimension_semantics=("parallel", "parallel"),
            vmem_limit_bytes=_vmem_limit(fp)),
    )(_bf16(mask), flow9.astype(jnp.float32))
    return out[..., :HW] if HWp != HW else out


# fused matmul epilogue for the context head (runs in the writeback; the
# VPU/EUP are idle while the kernel is MXU/DMA bound, so it is ~free).
def _ctx_epilogue(r, cols, *, hdim):
    # cnet head: tanh(net) for cols < hdim, relu(inp) otherwise.
    return jnp.where(cols < hdim, jnp.tanh(r), jnp.maximum(r, 0.0))


# ----------------------------------------------------------------------------
# Plain-JAX glue (faithful module methods + stand-ins for external modules)
# ----------------------------------------------------------------------------

def coords_grid(batch, ht, wd):
    """Channels-last coordinate grid: [B, H*W, 2] with (x, y)."""
    y, x = jnp.meshgrid(jnp.arange(ht), jnp.arange(wd), indexing="ij")
    coords = jnp.stack([x, y], axis=-1).astype(jnp.float32).reshape(ht * wd, 2)
    return jnp.broadcast_to(coords[None], (batch, ht * wd, 2))


def unfold3x3(x):
    """F.unfold(x, [3,3], padding=1) grouped as [N, C, 9, H, W] (zero pad)."""
    N, C, H, W = x.shape
    xp = jnp.pad(x, ((0, 0), (0, 0), (1, 1), (1, 1)))
    patches = []
    for ki in range(3):
        for kj in range(3):
            patches.append(xp[:, :, ki:ki + H, kj:kj + W])
    return jnp.stack(patches, axis=2)


def upsample_flow(flow_rows, mask_rows, H8, W8, ratio=8):
    """Exact semantics of SKFlow_MF8.upsample_flow (convex combination).

    flow_rows: [B, HW, 2] channels-last lowres flow; mask_rows: [B, HW, 9*r*r]
    (bf16 mask from the update head -- the transpose below moves half the bytes).
    """
    B, HW, _ = flow_rows.shape
    rr = ratio * ratio
    flow = jnp.transpose(flow_rows.reshape(B, H8, W8, 2), (0, 3, 1, 2))  # [B,2,H8,W8]
    # TODO(synk): a fully fused variant would index the 9 taps at lane stride
    # rr inside pallas_upsample and drop this bf16 transpose entirely.
    mask = jnp.transpose(mask_rows, (0, 2, 1)).reshape(B, 9, rr, HW)
    flow9 = unfold3x3(ratio * flow).reshape(B, 2, 9, HW)
    out = pallas_upsample(mask, flow9)                           # [B,2,rr,HW] f32
    out = out.reshape(B, 2, ratio, ratio, H8, W8)
    out = jnp.transpose(out, (0, 1, 4, 2, 5, 3))                 # [B,2,H,r,W,r]
    return out.reshape(B, 2, ratio * H8, ratio * W8)


def encode(imgs, Wp, bp, ratio, epilogue=None):
    # TODO(synk): real fnet/cnet are ResNet-style encoders (eval(args.Encoder));
    # this is a deterministic patch-embed stand-in whose matmul runs in Pallas.
    B, T, C, H, W = imgs.shape
    H8, W8 = H // ratio, W // ratio
    x = imgs.reshape(B, T, C, H8, ratio, W8, ratio)
    x = jnp.transpose(x, (0, 1, 3, 5, 2, 4, 6))
    x = x.reshape(B * T * H8 * W8, C * ratio * ratio)
    y = pallas_matmul(x, Wp, bias=bp, epilogue=epilogue, out_dtype=jnp.bfloat16)
    return y.reshape(B, T, H8 * W8, Wp.shape[1])                 # channels-last bf16


def bilinear_sample(img, x, y):
    """Zero-padded bilinear sampling. img: [N,C,h,w]; x,y: [N,P] -> [N,C,P]."""
    N, C, h, w = img.shape
    x0 = jnp.floor(x)
    y0 = jnp.floor(y)

    def gather(ix, iy):
        valid = ((ix >= 0) & (ix <= w - 1) & (iy >= 0) & (iy <= h - 1))
        valid = valid.astype(img.dtype)
        ixc = jnp.clip(ix, 0, w - 1).astype(jnp.int32)
        iyc = jnp.clip(iy, 0, h - 1).astype(jnp.int32)
        flat = iyc * w + ixc
        v = jnp.take_along_axis(img.reshape(N, C, h * w),
                                flat[:, None, :], axis=2)
        return v * valid[:, None, :]

    wx1 = x - x0
    wx0 = 1.0 - wx1
    wy1 = y - y0
    wy0 = 1.0 - wy1
    return (gather(x0, y0) * (wx0 * wy0)[:, None, :]
            + gather(x0 + 1, y0) * (wx1 * wy0)[:, None, :]
            + gather(x0, y0 + 1) * (wx0 * wy1)[:, None, :]
            + gather(x0 + 1, y0 + 1) * (wx1 * wy1)[:, None, :])


def corr_lookup(pyramid, coords, radius=4):
    # TODO(synk): CorrBlock's window gather stays in plain JAX; a Pallas version
    # needs a pl.ANY + make_async_copy row gather (or a one-hot MXU matmul) --
    # the single biggest remaining lever at real resolutions.
    B, HW, _ = coords.shape
    coords_p = coords.reshape(B * HW, 2)                          # (x, y)
    d = jnp.arange(-radius, radius + 1, dtype=jnp.float32)
    ddy, ddx = jnp.meshgrid(d, d, indexing="ij")
    delta = jnp.stack([ddx, ddy], axis=-1).reshape(-1, 2)         # [81, 2]
    outs = []
    for i, corr in enumerate(pyramid):
        centroid = coords_p / (2.0 ** i)
        pts = centroid[:, None, :] + delta[None, :, :]            # [N,81,2]
        sampled = bilinear_sample(corr, pts[..., 0], pts[..., 1])  # [N,1,81]
        outs.append(sampled.reshape(B, HW, -1))
    return jnp.concatenate(outs, axis=-1).astype(jnp.bfloat16)    # [B,HW,4*81]


# ----------------------------------------------------------------------------
# SKFlow_MF8 forward
# ----------------------------------------------------------------------------

def skflow_mf8_forward(images, params, *, hdim, cdim, iters=3, ratio=8,
                       corr_levels=4, corr_radius=4):
    T = len(images)
    imgs = jnp.stack(images, axis=1)                              # [B,T,C,H,W]
    B, T, C, H, W = imgs.shape
    H8, W8 = H // ratio, W // ratio
    HW = H8 * W8
    rr9 = 9 * ratio * ratio

    # images = 2*(images/255) - 1 folded exactly into the linear encoder
    # stand-ins: x_norm @ W + b == x @ (2W/255) + (b - sum_k W[k]).
    Wf = (2.0 / 255.0) * params["W_fnet"]
    bf = params["b_fnet"] - params["W_fnet"].sum(axis=0)
    Wc = (2.0 / 255.0) * params["W_cnet"]
    bc = params["b_cnet"] - params["W_cnet"].sum(axis=0)

    # Encoders (stand-ins): fnet over all T frames, cnet over first T-1,
    # tanh/relu context split fused into the cnet matmul writeback, bf16 out.
    fmaps = encode(imgs, Wf, bf, ratio)                           # [B,T,HW,D] bf16
    ctx_epi = functools.partial(_ctx_epilogue, hdim=hdim)
    cfeat = encode(imgs[:, :-1], Wc, bc, ratio, epilogue=ctx_epi)  # bf16
    nets = cfeat[..., :hdim].reshape(B * (T - 1) * HW, hdim)
    inps = cfeat[..., hdim:hdim + cdim].reshape(B * (T - 1) * HW, cdim)

    # All-pairs correlation: one batched pallas_call, 1/sqrt(D) fused, bf16
    # output, second fmap consumed row-major (no HBM transpose).
    D = fmaps.shape[-1]
    f1 = fmaps[:, :-1].reshape(B * (T - 1), HW, D)
    f2 = fmaps[:, 1:].reshape(B * (T - 1), HW, D)
    corr = pallas_corr(f1, f2, scale=1.0 / math.sqrt(float(D)),
                       out_dtype=jnp.bfloat16)                    # [P,HW,HW] bf16
    corr = corr.reshape(B, T - 1, HW, HW)

    # Correlation pyramids (bf16 in HBM; pooling accumulates in f32).
    # TODO(synk): the first 2x2 average pool could be fused into the corr writeback.
    pyramids = []
    for i in range(T - 1):
        c = corr[:, i].reshape(B * HW, 1, H8, W8)
        pyr = [c]
        for _ in range(corr_levels - 1):
            Np_, Cp, h, w = pyr[-1].shape
            nxt = pyr[-1].astype(jnp.float32).reshape(
                Np_, Cp, h // 2, 2, w // 2, 2).mean(axis=(3, 5))
            pyr.append(nxt.astype(jnp.bfloat16))
        pyramids.append(pyr)

    coord0s = [coords_grid(B, H8, W8) for _ in range(T - 1)]      # [B,HW,2] f32
    coord1s = [coords_grid(B, H8, W8) for _ in range(T - 1)]

    # TODO(synk): GMA Attention (args.use_gma) omitted -> att = None.

    # one-time bf16/f32 cast of the update-head weight segments
    w_net16 = _bf16(params["W_upd_net"])
    w_inp16 = _bf16(params["W_upd_inp"])
    w_cor16 = _bf16(params["W_upd_cor"])
    w_flo32 = params["W_upd_flo"].astype(jnp.float32)

    flow_predictions_list = [[] for _ in range(T - 1)]
    for _ in range(iters):
        corrs = jnp.stack([corr_lookup(pyramids[i], coord1s[i], corr_radius)
                           for i in range(T - 1)], axis=1)        # bf16
        corrs = corrs.reshape(B * (T - 1) * HW, -1)
        flows = jnp.stack([coord1s[i] - coord0s[i] for i in range(T - 1)], axis=1)
        flows = flows.reshape(B * (T - 1) * HW, 2)

        up_masks, nets, deltas = pallas_update(
            nets, inps, corrs, flows,
            w_net16, w_inp16, w_cor16, w_flo32, params["b_upd"],
            hdim=hdim, rr9=rr9)

        deltas = deltas.reshape(B, T - 1, HW, 2)
        up_masks = up_masks.reshape(B, T - 1, HW, rr9)
        coord1s = [coord1s[i] + deltas[:, i] for i in range(T - 1)]
        for i in range(T - 1):
            flow_predictions_list[i].append(
                upsample_flow(coord1s[i] - coord0s[i], up_masks[:, i],
                              H8, W8, ratio))
    return flow_predictions_list


# ----------------------------------------------------------------------------
# Main
# ----------------------------------------------------------------------------

if __name__ == "__main__":
    key = jax.random.PRNGKey(0)
    k1, k2, k3, k4, k5, k6, k7 = jax.random.split(key, 7)

    # small shapes consistent with the module (decoder_dim=128 -> hdim=cdim=64)
    B, T, C, H, W = 1, 3, 3, 64, 64
    ratio = 8
    hdim = cdim = 64
    fdim = 128                                    # lane-dense encoder widths
    corr_radius = 4
    corr_levels = 4
    patch_dim = C * ratio * ratio                                   # 192
    corr_dim = corr_levels * (2 * corr_radius + 1) ** 2             # 324
    rr9 = 9 * ratio * ratio                                         # 576
    upd_out = rr9 + hdim + 2                       # 642, layout [mask|net|delta]
    upd_out_pad = _round_up(upd_out, 128)          # 768 lane-dense

    def pad_cols(w):
        return jnp.pad(w, ((0, 0), (0, upd_out_pad - upd_out)))

    params = {
        "W_fnet": 0.02 * jax.random.normal(k1, (patch_dim, fdim), jnp.float32),
        "b_fnet": jnp.zeros((fdim,), jnp.float32),
        "W_cnet": 0.02 * jax.random.normal(k2, (patch_dim, hdim + cdim), jnp.float32),
        "b_cnet": jnp.zeros((hdim + cdim,), jnp.float32),
        "W_upd_net": pad_cols(0.02 * jax.random.normal(k3, (hdim, upd_out), jnp.float32)),
        "W_upd_inp": pad_cols(0.02 * jax.random.normal(k4, (cdim, upd_out), jnp.float32)),
        "W_upd_cor": pad_cols(0.02 * jax.random.normal(k5, (corr_dim, upd_out), jnp.float32)),
        "W_upd_flo": pad_cols(0.02 * jax.random.normal(k6, (2, upd_out), jnp.float32)),
        "b_upd": jnp.zeros((upd_out_pad,), jnp.float32),
    }

    img_keys = jax.random.split(k7, T)
    images = [jax.random.uniform(img_keys[i], (B, C, H, W), jnp.float32,
                                 0.0, 255.0) for i in range(T)]

    preds = skflow_mf8_forward(images, params, hdim=hdim, cdim=cdim, iters=3,
                               ratio=ratio, corr_levels=corr_levels,
                               corr_radius=corr_radius)
    finals = [p[-1] for p in preds]
    finals = jax.block_until_ready(finals)
    assert finals[0].shape == (B, 2, H, W)
    assert len(preds) == T - 1 and len(preds[0]) == 3
    assert all(bool(jnp.isfinite(f).all()) for f in finals)
    print("KERNEL_OK")
</pallas_src>

<mosaic_0001>
module attributes {stable_mosaic.version = 11 : i64} {
  func.func @_mm_kernel_k1(%arg0: i32, %arg1: i32, %arg2: memref<96x192xbf16, #tpu.memory_space<vmem>>, %arg3: memref<192x128xbf16, #tpu.memory_space<vmem>>, %arg4: memref<1x128xf32, #tpu.memory_space<vmem>>, %arg5: memref<96x128xbf16, #tpu.memory_space<vmem>>) attributes {dimension_semantics = [#tpu.dimension_semantics<parallel>, #tpu.dimension_semantics<parallel>], iteration_bounds = array<i64: 2, 1>, scalar_prefetch = 0 : i64, scratch_operands = 0 : i64, tpu.core_type = #tpu.core_type<tc>, window_params = [{transform_indices = @transform_0, window_bounds = array<i64: 96, 192>}, {transform_indices = @transform_1, window_bounds = array<i64: 192, 128>}, {transform_indices = @transform_2, window_bounds = array<i64: 1, 128>}, {transform_indices = @transform_3, window_bounds = array<i64: 96, 128>}]} {
    %c0 = arith.constant 0 : index
    %c0_0 = arith.constant 0 : index
    %0 = vector.load %arg2[%c0, %c0_0] : memref<96x192xbf16, #tpu.memory_space<vmem>>, vector<96x192xbf16>
    %c0_1 = arith.constant 0 : index
    %c0_2 = arith.constant 0 : index
    %1 = vector.load %arg3[%c0_1, %c0_2] : memref<192x128xbf16, #tpu.memory_space<vmem>>, vector<192x128xbf16>
    %cst = arith.constant dense<0.000000e+00> : vector<96x128xf32>
    %2 = tpu.matmul %0, %1, %cst {dimension_numbers = #tpu.dot_dimension_numbers<[1], [0], [0], [1], [0, 0, 1, 1], [], []>} : vector<96x192xbf16>, vector<192x128xbf16>, vector<96x128xf32> -> vector<96x128xf32>
    %cst_3 = arith.constant 1.000000e+00 : f32
    %3 = vector.broadcast %cst_3 : f32 to vector<96x128xf32>
    %4 = arith.mulf %2, %3 : vector<96x128xf32>
    %c0_4 = arith.constant 0 : index
    %c0_5 = arith.constant 0 : index
    %5 = vector.load %arg4[%c0_4, %c0_5] : memref<1x128xf32, #tpu.memory_space<vmem>>, vector<1x128xf32>
    %6 = vector.broadcast %5 : vector<1x128xf32> to vector<96x128xf32>
    %7 = arith.addf %4, %6 : vector<96x128xf32>
    %8 = arith.truncf %7 : vector<96x128xf32> to vector<96x128xbf16>
    %c0_6 = arith.constant 0 : index
    %c0_7 = arith.constant 0 : index
    %9 = vector.load %arg5[%c0_6, %c0_7] : memref<96x128xbf16, #tpu.memory_space<vmem>>, vector<96x128xbf16>
    tpu.vector_store %arg5[%c0_6, %c0_7], %8 {strides = array<i32>} : memref<96x128xbf16, #tpu.memory_space<vmem>>, vector<96x128xbf16>,
    return
  }
  func.func @transform_0(%arg0: i32, %arg1: i32) -> (i32, i32) {
    %c0_i32 = arith.constant 0 : i32
    %c0_i32_0 = arith.constant 0 : i32
    return %arg0, %c0_i32 : i32, i32
  }
  func.func @transform_1(%arg0: i32, %arg1: i32) -> (i32, i32) {
    %c0_i32 = arith.constant 0 : i32
    %c0_i32_0 = arith.constant 0 : i32
    return %c0_i32, %arg1 : i32, i32
  }
  func.func @transform_2(%arg0: i32, %arg1: i32) -> (i32, i32) {
    %c0_i32 = arith.constant 0 : i32
    %c0_i32_0 = arith.constant 0 : i32
    return %c0_i32, %arg1 : i32, i32
  }
  func.func @transform_3(%arg0: i32, %arg1: i32) -> (i32, i32) {
    %c0_i32 = arith.constant 0 : i32
    return %arg0, %arg1 : i32, i32
  }
}

</mosaic_0001>

<llo_original>
// kernel: tpu_custom_call.1
$region0: #{tpu_custom_call.1}
  #allocation0 [shape = 'u32[]', space=smem, size = 0x4, offset = 0x4, fixed_abs, tag = 'smem constant byte address 0x4 - core index']
  #allocation1 [shape = 'u32[144,128]{1,0:T(1,128)}', space=vmem, size = 0x12000, scoped, tag = 'internal scratch']
  %s0 = inlined_call_operand.hbm [shape: bf16[192,192], index: 0, kind: input, shape index: {}]
  %s1 = inlined_call_operand.hbm [shape: bf16[192,128], index: 1, kind: input, shape index: {}]
  %s2 = inlined_call_operand.vmem [shape: f32[1,128], index: 2, kind: input, shape index: {}]
  %s3 = inlined_call_operand.hbm [shape: bf16[192,128], index: 3, kind: output, shape index: {}]
  %s4 = sld [smem:[#allocation0]]
  $region53: #{tpu_custom_call.1} parent=0
    _
  %s6 = ssub.s32 1, %s4
  %s7 = scalar_select 0, %s6, %s4
  $region1: #{tpu_custom_call.1} parent=0
    #allocation2 [shape = 'u8[98304]{0}', space=vmem, size = 0x18000, scoped, tag = 'input window, operand 0']
    #allocation3 [shape = 's32[2]{0}', space=sflag, size = 0x8, scoped, tag = 'scoped memory for tpu_custom_call.1']
    #allocation4 [shape = 's32[2]{0}', space=sflag, size = 0x8, scoped, tag = 'scoped memory for tpu_custom_call.1']
    #allocation5 [shape = 'u8[49152]{0}', space=vmem, size = 0xc000, scoped, tag = 'input window, operand 1, single buffered']
    #allocation6 [shape = 's32[1]{0}', space=sflag, size = 0x4, scoped, tag = 'scoped memory for tpu_custom_call.1']
    #allocation7 [shape = 'u8[49152]{0}', space=vmem, size = 0xc000, scoped, tag = 'output window, operand 0']
    %8 = vsyncpa [#allocation3], 0
    %s9 = scalar_lea.sflag [#allocation3], 1
    %10 = vsyncpa %s9, 0
    %11 = vsyncpa [#allocation6], 0
    %12 = vsyncpa [#allocation4], 0
    %s13 = scalar_lea.sflag [#allocation4], 1
    %14 = vsyncpa %s13, 0
    loop: start=0, step=1, limit=4
    $region2: #{tpu_custom_call.1} parent=1 // loop_pre_header
      _
    $region3: #{tpu_custom_call.1} parent=1 // loop_header
      %s16 = sphi 0, %s20
      %p17 = scmp.ge.s32.totalorder %s16, 4
      %s23 = sphi 0, %s35
      %s24 = sphi 0, %s31
      %s25 = sphi 0, %s23
      %s26 = sphi 0, %s24
      %s27 = sphi 0, %s25
      %s28 = sphi 0, %s26
      %s38 = sphi 0, %s40
      %s41 = sphi 0, %s38
      %s42 = sphi 0, %s41
      %s58 = sphi 0, %s42
      %s64 = sphi 0, %s66
      %s67 = sphi 0, %s64
      %s68 = sphi 0, %s67
      %s84 = sphi 0, %s68
      %s90 = sphi 0, %s92
      %s93 = sphi 0, %s90
      %s94 = sphi 0, %s93
      %s110 = sphi 0, %s94
      %s118 = sphi 0, %s120
      %s121 = sphi 0, %s118
      %s122 = sphi 0, %s121
      %s138 = sphi 0, %s122
    $region4: #{tpu_custom_call.1} parent=1 // loop_header_branch
      %19 = sbr.rel (%p17) target = $region8
    $region5: #{tpu_custom_call.1} parent=1 // loop_body
      %s21 = ssub.s32 %s16, 1
      %s22 = ssub.s32 %s16, 2
      %s29 = sadd.s32 1, %s24
      %p30 = scmp.ge.s32.totalorder %s29, 1
      %s31 = scalar_select %p30, 0, %s29
      %s32 = sadd.s32 1, %s23
      %s33 = scalar_select %p30, %s32, %s23
      %p34 = scmp.ge.s32.totalorder %s33, 2
      %s35 = scalar_select %p34, 0, %s33
      %s36 = ssub.s32 %s23, %s35
      %p37 = scmp.eq.s32.totalorder %s36, 0
      %s39 = sadd.s32 %s38, 1
      %s40 = scalar_select %p37, %s38, %s39
      %p43 = pneg %p37
      %p44 = scmp.eq.s32.totalorder %s16, 1
      %p45 = por %p43, %p44
      %p46 = scmp.ne.s32.totalorder %s38, %s41
      %p47 = scmp.eq.s32.totalorder %s16, 0
      %p48 = por %p46, %p47
      %p49 = scmp.ne.s32.totalorder %s38, %s41
      %p50 = scmp.eq.s32.totalorder %s21, 1
      %p51 = por %p49, %p50
      %p52 = scmp.ne.s32.totalorder %s41, %s42
      %p53 = scmp.eq.s32.totalorder %s21, 0
      %p54 = por %p52, %p53
      %p55 = scmp.ne.s32.totalorder %s41, %s42
      %p56 = scmp.eq.s32.totalorder %s22, 1
      %p57 = por %p55, %p56
      %p59 = scmp.ne.s32.totalorder %s42, %s58
      %p60 = scmp.eq.s32.totalorder %s22, 0
      %p61 = por %p59, %p60
      %s62 = ssub.s32 %s24, %s31
      %p63 = scmp.eq.s32.totalorder %s62, 0
      %s65 = sadd.s32 %s64, 1
      %s66 = scalar_select %p63, %s64, %s65
      %p69 = pneg %p63
      %p70 = scmp.eq.s32.totalorder %s16, 1
      %p71 = por %p69, %p70
      %p72 = scmp.ne.s32.totalorder %s64, %s67
      %p73 = scmp.eq.s32.totalorder %s16, 0
      %p74 = por %p72, %p73
      %p75 = scmp.ne.s32.totalorder %s64, %s67
      %p76 = scmp.eq.s32.totalorder %s21, 1
      %p77 = por %p75, %p76
      %p78 = scmp.ne.s32.totalorder %s67, %s68
      %p79 = scmp.eq.s32.totalorder %s21, 0
      %p80 = por %p78, %p79
      %p81 = scmp.ne.s32.totalorder %s67, %s68
      %p82 = scmp.eq.s32.totalorder %s22, 1
      %p83 = por %p81, %p82
      %p85 = scmp.ne.s32.totalorder %s68, %s84
      %p86 = scmp.eq.s32.totalorder %s22, 0
      %p87 = por %p85, %p86
      %s88 = ssub.s32 %s24, %s31
      %p89 = scmp.eq.s32.totalorder %s88, 0
      %s91 = sadd.s32 %s90, 1
      %s92 = scalar_select %p89, %s90, %s91
      %p95 = pneg %p89
      %p96 = scmp.eq.s32.totalorder %s16, 1
      %p97 = por %p95, %p96
      %p98 = scmp.ne.s32.totalorder %s90, %s93
      %p99 = scmp.eq.s32.totalorder %s16, 0
      %p100 = por %p98, %p99
      %p101 = scmp.ne.s32.totalorder %s90, %s93
      %p102 = scmp.eq.s32.totalorder %s21, 1
      %p103 = por %p101, %p102
      %p104 = scmp.ne.s32.totalorder %s93, %s94
      %p105 = scmp.eq.s32.totalorder %s21, 0
      %p106 = por %p104, %p105
      %p107 = scmp.ne.s32.totalorder %s93, %s94
      %p108 = scmp.eq.s32.totalorder %s22, 1
      %p109 = por %p107, %p108
      %p111 = scmp.ne.s32.totalorder %s94, %s110
      %p112 = scmp.eq.s32.totalorder %s22, 0
      %p113 = por %p111, %p112
      %s114 = ssub.s32 %s23, %s35
      %s115 = ssub.s32 %s24, %s31
      %s116 = sor.u32 %s114, %s115
      %p117 = scmp.eq.s32.totalorder %s116, 0
      %s119 = sadd.s32 %s118, 1
      %s120 = scalar_select %p117, %s118, %s119
      %p123 = pneg %p117
      %p124 = scmp.eq.s32.totalorder %s16, 1
      %p125 = por %p123, %p124
      %p126 = scmp.ne.s32.totalorder %s118, %s121
      %p127 = scmp.eq.s32.totalorder %s16, 0
      %p128 = por %p126, %p127
      %p129 = scmp.ne.s32.totalorder %s118, %s121
      %p130 = scmp.eq.s32.totalorder %s21, 1
      %p131 = por %p129, %p130
      %p132 = scmp.ne.s32.totalorder %s121, %s122
      %p133 = scmp.eq.s32.totalorder %s21, 0
      %p134 = por %p132, %p133
      %p135 = scmp.ne.s32.totalorder %s121, %s122
      %p136 = scmp.eq.s32.totalorder %s22, 1
      %p137 = por %p135, %p136
      %p139 = scmp.ne.s32.totalorder %s122, %s138
      %p140 = scmp.eq.s32.totalorder %s22, 0
      %p141 = por %p139, %p140
      %p142 = scmp.le.s32.totalorder 1, %s16
      %p143 = scmp.lt.s32.totalorder %s16, 3
      %p144 = pnand %p142, %p143
      %p145 = pneg %p144
      // Predicated region
      $region9: #{tpu_custom_call.1} parent=5 // pred_check
        _
      $region10: #{tpu_custom_call.1} parent=5 // pred_check_branch
        %147 = sbr.rel (%p144) target = $region12
      $region11: #{tpu_custom_call.1} parent=5 // pred_region
        %s148 = ssub.s32 %s16, 1
        // Predicated region
        $region13: #{tpu_custom_call.1} parent=11 // pred_check
          %p149 = pneg %p80
        $region14: #{tpu_custom_call.1} parent=11 // pred_check_branch
          %151 = sbr.rel (%p149) target = $region16
        $region15: #{tpu_custom_call.1} parent=11 // pred_region
          %s153 = ssub.s32 1536, 1536
          %154 = vsyncadd [#allocation6], %s153
          %s155 = smul.addr %s26, 64
          %s156 = scalar_lea.hbm %s1, %s155
          %s157 = sshll.u32 [#allocation5], 4
          %s158 = int_to_ptr.vmem [resolvable:$true] %s157
          %163 = dma.hbm_to_vmem [thread:$0]  %s156, 1536, %s158, [#allocation6], 64, 64, 4
        $region16: #{tpu_custom_call.1} parent=11 // pred_fallthru
          _
        // Predicated region
        $region17: #{tpu_custom_call.1} parent=11 // pred_check
          %p164 = pneg %p106
        $region18: #{tpu_custom_call.1} parent=11 // pred_check_branch
          %166 = sbr.rel (%p164) target = $region20
        $region19: #{tpu_custom_call.1} parent=11 // pred_region
          %p167 = scmp.lt.s32.totalorder %s26, 0
          %s168 = scalar_select %p167, %s26, 0
          %s169 = scalar_lea.vmem %s2, %s168
        $region20: #{tpu_custom_call.1} parent=11 // pred_fallthru
          _
      $region12: #{tpu_custom_call.1} parent=5 // pred_fallthru
        _
      %p170 = scmp.lt.s32.totalorder %s16, 2
      // Predicated region
      $region21: #{tpu_custom_call.1} parent=5 // pred_check
        %p171 = pneg %p170
      $region22: #{tpu_custom_call.1} parent=5 // pred_check_branch
        %173 = sbr.rel (%p171) target = $region24
      $region23: #{tpu_custom_call.1} parent=5 // pred_region
        // Predicated region
        $region25: #{tpu_custom_call.1} parent=23 // pred_check
          %p174 = pneg %p48
        $region26: #{tpu_custom_call.1} parent=23 // pred_check_branch
          %176 = sbr.rel (%p174) target = $region28
        $region27: #{tpu_custom_call.1} parent=23 // pred_region
          %s177 = sand.u32 %s38, 1
          %s178 = scalar_lea.sflag [#allocation3], %s177
          %s179 = sand.u32 %s38, 1
          %s180 = smul.addr %s179, 96
          %s181 = scalar_lea.vmem [#allocation2], %s180
          %s182 = smul.u32 12, %s23
          %s184 = ssub.s32 1536, 1536
          %185 = vsyncadd %s178, %s184
          %s186 = smul.addr %s182, 2
          %s187 = smul.addr %s186, 64
          %s188 = scalar_lea.hbm %s0, %s187
          %s189 = sshll.u32 %s181, 4
          %s190 = int_to_ptr.vmem [resolvable:$true] %s189
          %195 = dma.hbm_to_vmem [thread:$0]  %s188, 1536, %s190, %s178, 128, 128, 8
        $region28: #{tpu_custom_call.1} parent=23 // pred_fallthru
          _
      $region24: #{tpu_custom_call.1} parent=5 // pred_fallthru
        _
      %p196 = scmp.le.s32.totalorder 1, %s16
      %p197 = scmp.lt.s32.totalorder %s16, 3
      %p198 = pnand %p196, %p197
      %p199 = pneg %p198
      // Predicated region
      $region29: #{tpu_custom_call.1} parent=5 // pred_check
        _
      $region30: #{tpu_custom_call.1} parent=5 // pred_check_branch
        %201 = sbr.rel (%p198) target = $region32
      $region31: #{tpu_custom_call.1} parent=5 // pred_region
        %s202 = ssub.s32 %s16, 1
        %s203 = sand.u32 %s41, 1
        %s204 = scalar_lea.sflag [#allocation3], %s203
        %s205 = sand.u32 %s41, 1
        %s206 = smul.addr %s205, 96
        %s207 = scalar_lea.vmem [#allocation2], %s206
        // Predicated region
        $region33: #{tpu_custom_call.1} parent=31 // pred_check
          %p208 = pneg %p54
        $region34: #{tpu_custom_call.1} parent=31 // pred_check_branch
          %210 = sbr.rel (%p208) target = $region36
        $region35: #{tpu_custom_call.1} parent=31 // pred_region
          %211 = dma.done %s204, 1536
        $region36: #{tpu_custom_call.1} parent=31 // pred_fallthru
          _
        // Predicated region
        $region37: #{tpu_custom_call.1} parent=31 // pred_check
          %p212 = pneg %p80
        $region38: #{tpu_custom_call.1} parent=31 // pred_check_branch
          %214 = sbr.rel (%p212) target = $region40
        $region39: #{tpu_custom_call.1} parent=31 // pred_region
          %215 = dma.done [#allocation6], 1536
        $region40: #{tpu_custom_call.1} parent=31 // pred_fallthru
          _
        %s216 = sand.u32 %s41, 1
        %s217 = scalar_lea.sflag [#allocation3], %s216
        %s218 = sand.u32 %s41, 1
        %s219 = smul.addr %s218, 96
        %s220 = scalar_lea.vmem [#allocation2], %s219
        %p221 = pneg %p54
        %p222 = pneg %p51
        %p223 = pneg %p80
        %p224 = pneg %p77
        %p225 = scmp.lt.s32.totalorder %s26, 0
        %s226 = scalar_select %p225, %s26, 0
        %s227 = scalar_lea.vmem %s2, %s226
        %p228 = pneg %p106
        %p229 = pneg %p103
        %p230 = pneg %p134
        %p231 = pneg %p131
        %s232 = sand.u32 %s121, 1
        %s233 = scalar_lea.sflag [#allocation4], %s232
        %s234 = sand.u32 %s121, 1
        %s235 = smul.addr %s234, 48
        %s236 = scalar_lea.vmem [#allocation7], %s235
        %s237 = smul.u32 12, %s25
        %p238 = scmp.lt.s32.totalorder %s26, 0
        %s239 = scalar_select %p238, %s26, 0
        %s240 = scalar_lea.vmem %s2, %s239
        %s241 = smul.u32 12, %s25
        %v243 = vld [vmem:[%s207] sm:$0xff]
        %v244 = vld [vmem:[%s207 + $0x8] sm:$0xff]
        %v245 = vld [vmem:[%s207 + $0x10] sm:$0xff]
        %v246 = vld [vmem:[%s207 + $0x18] sm:$0xff]
        %v247 = vld [vmem:[%s207 + $0x20] sm:$0xff]
        %v248 = vld [vmem:[%s207 + $0x28] sm:$0xff]
        %v249 = vld [vmem:[%s207 + $0x30] sm:$0xff]
        %v250 = vld [vmem:[%s207 + $0x38] sm:$0xff]
        %v251 = vld [vmem:[%s207 + $0x40] sm:$0xff]
        %v252 = vld [vmem:[%s207 + $0x48] sm:$0xff]
        %v253 = vld [vmem:[%s207 + $0x50] sm:$0xff]
        %v254 = vld [vmem:[%s207 + $0x58] sm:$0xff]
        %v255 = vld [vmem:[#allocation5] sm:$0xf]
        %v256 = vld [vmem:[#allocation5 + $0x4] sm:$0xf]
        %v257 = vld [vmem:[#allocation5 + $0x8] sm:$0xf]
        %v258 = vld [vmem:[#allocation5 + $0xc] sm:$0xf]
        %v259 = vld [vmem:[#allocation5 + $0x10] sm:$0xf]
        %v260 = vld [vmem:[#allocation5 + $0x14] sm:$0xf]
        %v261 = vld [vmem:[#allocation5 + $0x18] sm:$0xf]
        %v262 = vld [vmem:[#allocation5 + $0x1c] sm:$0xf]
        %v263 = vld [vmem:[#allocation5 + $0x20] sm:$0xf]
        %v264 = vld [vmem:[#allocation5 + $0x24] sm:$0xf]
        %v265 = vld [vmem:[#allocation5 + $0x28] sm:$0xf]
        %v266 = vld [vmem:[#allocation5 + $0x2c] sm:$0xf]
        %v267 = vld [vmem:[#allocation5 + $0x30] sm:$0xf]
        %v268 = vld [vmem:[#allocation5 + $0x34] sm:$0xf]
        %v269 = vld [vmem:[#allocation5 + $0x38] sm:$0xf]
        %v270 = vld [vmem:[#allocation5 + $0x3c] sm:$0xf]
        %v271 = vld [vmem:[#allocation5 + $0x40] sm:$0xf]
        %v272 = vld [vmem:[#allocation5 + $0x44] sm:$0xf]
        %v273 = vld [vmem:[#allocation5 + $0x48] sm:$0xf]
        %v274 = vld [vmem:[#allocation5 + $0x4c] sm:$0xf]
        %v275 = vld [vmem:[#allocation5 + $0x50] sm:$0xf]
        %v276 = vld [vmem:[#allocation5 + $0x54] sm:$0xf]
        %v277 = vld [vmem:[#allocation5 + $0x58] sm:$0xf]
        %v278 = vld [vmem:[#allocation5 + $0x5c] sm:$0xf]
        %v279 = vld [vmem:[%s240] sm:$0x1]
        %v281 = vlaneseq
        %v282 = vshrl.u32 %v281, 7
        %v283 = vsub.s32 0, %v282
        %v284 = vrot.slane %v279, %v283
        %v298 = vunpack.c.l.b16 %v243
        %v299 = vunpack.c.h.b16 %v243
        %v300 = vunpack.c.l.b16 %v244
        %v301 = vunpack.c.h.b16 %v244
        %v302 = vunpack.c.l.b16 %v245
        %v303 = vunpack.c.h.b16 %v245
        %v304 = vunpack.c.l.b16 %v246
        %v305 = vunpack.c.h.b16 %v246
        %v306 = vunpack.c.l.b16 %v247
        %v307 = vunpack.c.h.b16 %v247
        %v308 = vunpack.c.l.b16 %v248
        %v309 = vunpack.c.h.b16 %v248
        %v310 = vunpack.c.l.b16 %v249
        %v311 = vunpack.c.h.b16 %v249
        %v312 = vunpack.c.l.b16 %v250
        %v313 = vunpack.c.h.b16 %v250
        %v314 = vunpack.c.l.b16 %v251
        %v315 = vunpack.c.h.b16 %v251
        %v316 = vunpack.c.l.b16 %v252
        %v317 = vunpack.c.h.b16 %v252
        %v318 = vunpack.c.l.b16 %v253
        %v319 = vunpack.c.h.b16 %v253
        %v320 = vunpack.c.l.b16 %v254
        %v321 = vunpack.c.h.b16 %v254
        %v322 = vpack.c.b16 %v300, %v298
        %v323 = vpack.c.b16 %v301, %v299
        %v324 = vpack.c.b16 %v304, %v302
        %v325 = vpack.c.b16 %v305, %v303
        %v326 = vpack.c.b16 %v308, %v306
        %v327 = vpack.c.b16 %v309, %v307
        %v328 = vpack.c.b16 %v312, %v310
        %v329 = vpack.c.b16 %v313, %v311
        %v330 = vpack.c.b16 %v316, %v314
        %v331 = vpack.c.b16 %v317, %v315
        %v332 = vpack.c.b16 %v320, %v318
        %v333 = vpack.c.b16 %v321, %v319
        %v364 = vunpack.c.l.b16 %v255
        %v365 = vunpack.c.l.b16 %v256
        %v366 = vunpack.c.l.b16 %v257
        %v367 = vunpack.c.l.b16 %v258
        %v368 = vunpack.c.l.b16 %v259
        %v369 = vunpack.c.l.b16 %v260
        %v370 = vunpack.c.l.b16 %v261
        %v371 = vunpack.c.l.b16 %v262
        %v372 = vunpack.c.l.b16 %v263
        %v373 = vunpack.c.l.b16 %v264
        %v374 = vunpack.c.l.b16 %v265
        %v375 = vunpack.c.l.b16 %v266
        %v376 = vunpack.c.l.b16 %v267
        %v377 = vunpack.c.l.b16 %v268
        %v378 = vunpack.c.l.b16 %v269
        %v379 = vunpack.c.l.b16 %v270
        %v380 = vunpack.c.l.b16 %v271
        %v381 = vunpack.c.l.b16 %v272
        %v382 = vunpack.c.l.b16 %v273
        %v383 = vunpack.c.l.b16 %v274
        %v384 = vunpack.c.l.b16 %v275
        %v385 = vunpack.c.l.b16 %v276
        %v386 = vunpack.c.l.b16 %v277
        %v387 = vunpack.c.l.b16 %v278
        %v388 = vpack.c.b16 %v365, %v364
        %v389 = vpack.c.b16 %v367, %v366
        %v390 = vpack.c.b16 %v369, %v368
        %v391 = vpack.c.b16 %v371, %v370
        %v392 = vpack.c.b16 %v373, %v372
        %v393 = vpack.c.b16 %v375, %v374
        %v394 = vpack.c.b16 %v377, %v376
        %v395 = vpack.c.b16 %v379, %v378
        %v396 = vpack.c.b16 %v381, %v380
        %v397 = vpack.c.b16 %v383, %v382
        %v398 = vpack.c.b16 %v385, %v384
        %v399 = vpack.c.b16 %v387, %v386
        %vm412 = vcmask 523264
        %v414 = vsel %vm412, %v323, 0
        %v417 = vsel %vm412, %v325, 0
        %v420 = vsel %vm412, %v327, 0
        %v423 = vsel %vm412, %v329, 0
        %v426 = vsel %vm412, %v331, 0
        %v429 = vsel %vm412, %v333, 0
        %431 = vmatprep.subr.bf16.mxu0 0
        %432 = vmatpush1.bf16.msra.mxu0 %v388
        %433 = vmatprep.subr.bf16.mxu0 0
        %434 = vmatpush1.bf16.msra.mxu0 %v389
        %435 = vmatprep.subr.bf16.mxu0 0
        %436 = vmatpush1.bf16.msra.mxu0 %v390
        %437 = vmatprep.subr.bf16.mxu0 0
        %438 = vmatpush1.bf16.msra.mxu0 %v391
        %439 = vmatprep.subr.bf16.mxu0 0
        %440 = vmatpush1.bf16.msra.mxu0 %v392
        %441 = vmatprep.subr.bf16.mxu0 0
        %442 = vmatpush1.bf16.msra.mxu0 %v393
        %443 = vmatprep.subr.bf16.mxu0 0
        %444 = vmatpush1.bf16.msra.mxu0 %v394
        %445 = vmatprep.subr.bf16.mxu0 0
        %446 = vmatpush1.bf16.msra.mxu0 %v395
        %447 = vmatprep.subr.bf16.mxu0 0
        %448 = vmatpush1.bf16.msra.mxu0 %v396
        %449 = vmatprep.subr.bf16.mxu0 0
        %450 = vmatpush1.bf16.msra.mxu0 %v397
        %451 = vmatprep.subr.bf16.mxu0 0
        %452 = vmatpush1.bf16.msra.mxu0 %v398
        %453 = vmatprep.subr.bf16.mxu0 0
        %454 = vmatpush1.bf16.msra.mxu0 %v399
        %455 = vmatprep.subr.bf16.mxu0 0
        %456 = vmatpush1.bf16.msra.mxu0 0
        %457 = vmatprep.subr.bf16.mxu0 0
        %458 = vmatpush1.bf16.msra.mxu0 0
        %459 = vmatprep.subr.bf16.mxu0 0
        %460 = vmatpush1.bf16.msra.mxu0 0
        %461 = vmatprep.subr.bf16.mxu0 0
        %462 = vmatpush1.bf16.msra.mxu0 0
        %463 = vmatprep.mubr.bf16.mxu0 %v414
        %464 = vmatmul.mubr.bf16.gmra.mrb[0].mxu0 %v322
        %v465 = vpop.f32.mrb[0].mxu0
        %v466 = vadd.f32 %v284, %v465
        %v467 = vpop.f32.mrb[0].mxu0
        %v468 = vpop.f32.mrb[0].mxu0
        %v469 = vadd.f32 %v284, %v468
        %v470 = vpop.f32.mrb[0].mxu0
        %471 = vmatprep.mubr.bf16.mxu0 %v417
        %472 = vmatmul.mubr.bf16.gmra.mrb[0].mxu0 %v324
        %v473 = vpop.f32.mrb[0].mxu0
        %v474 = vadd.f32 %v284, %v473
        %v475 = vpop.f32.mrb[0].mxu0
        %v476 = vpop.f32.mrb[0].mxu0
        %v477 = vadd.f32 %v284, %v476
        %v478 = vpop.f32.mrb[0].mxu0
        %479 = vmatprep.mubr.bf16.mxu0 %v420
        %480 = vmatmul.mubr.bf16.gmra.mrb[0].mxu0 %v326
        %v481 = vpop.f32.mrb[0].mxu0
        %v482 = vadd.f32 %v284, %v481
        %v483 = vpop.f32.mrb[0].mxu0
        %v484 = vpop.f32.mrb[0].mxu0
        %v485 = vadd.f32 %v284, %v484
        %v486 = vpop.f32.mrb[0].mxu0
        %487 = vmatprep.mubr.bf16.mxu0 %v423
        %488 = vmatmul.mubr.bf16.gmra.mrb[0].mxu0 %v328
        %v489 = vpop.f32.mrb[0].mxu0
        %v490 = vadd.f32 %v284, %v489
        %v491 = vpop.f32.mrb[0].mxu0
        %v492 = vpop.f32.mrb[0].mxu0
        %v493 = vadd.f32 %v284, %v492
        %v494 = vpop.f32.mrb[0].mxu0
        %495 = vmatprep.mubr.bf16.mxu0 %v426
        %496 = vmatmul.mubr.bf16.gmra.mrb[0].mxu0 %v330
        %v497 = vpop.f32.mrb[0].mxu0
        %v498 = vadd.f32 %v284, %v497
        %v499 = vpop.f32.mrb[0].mxu0
        %v500 = vpop.f32.mrb[0].mxu0
        %v501 = vadd.f32 %v284, %v500
        %v502 = vpop.f32.mrb[0].mxu0
        %503 = vmatprep.mubr.bf16.mxu0 %v429
        %504 = vmatmul.mubr.bf16.gmra.mrb[0].mxu0 %v332
        %v505 = vpop.f32.mrb[0].mxu0
        %v506 = vadd.f32 %v284, %v505
        %v507 = vpop.f32.mrb[0].mxu0
        %v508 = vpop.f32.mrb[0].mxu0
        %v509 = vadd.f32 %v284, %v508
        %v510 = vpop.f32.mrb[0].mxu0
        %511 = vdwg.mxu0
        %v512 = vpack.c.bf16 %v469, %v466
        %v513 = vpack.c.bf16 %v477, %v474
        %v514 = vpack.c.bf16 %v485, %v482
        %v515 = vpack.c.bf16 %v493, %v490
        %v516 = vpack.c.bf16 %v501, %v498
        %v517 = vpack.c.bf16 %v509, %v506
        %v524 = vunpack.c.l.b16 %v512
        %v525 = vunpack.c.h.b16 %v512
        %v526 = vunpack.c.l.b16 %v513
        %v527 = vunpack.c.h.b16 %v513
        %v528 = vunpack.c.l.b16 %v514
        %v529 = vunpack.c.h.b16 %v514
        %v530 = vunpack.c.l.b16 %v515
        %v531 = vunpack.c.h.b16 %v515
        %v532 = vunpack.c.l.b16 %v516
        %v533 = vunpack.c.h.b16 %v516
        %v534 = vunpack.c.l.b16 %v517
        %v535 = vunpack.c.h.b16 %v517
        %v536 = vpack.c.b16 %v524, %v524
        %v537 = vpack.c.b16 %v525, %v525
        %v538 = vpack.c.b16 %v526, %v526
        %v539 = vpack.c.b16 %v527, %v527
        %v540 = vpack.c.b16 %v528, %v528
        %v541 = vpack.c.b16 %v529, %v529
        %v542 = vpack.c.b16 %v530, %v530
        %v543 = vpack.c.b16 %v531, %v531
        %v544 = vpack.c.b16 %v532, %v532
        %v545 = vpack.c.b16 %v533, %v533
        %v546 = vpack.c.b16 %v534, %v534
        %v547 = vpack.c.b16 %v535, %v535
        %560 = vst [vmem:[%s236] sm:$0xf] %v536
        %561 = vst [vmem:[%s236 + $0x4] sm:$0xf] %v537
        %562 = vst [vmem:[%s236 + $0x8] sm:$0xf] %v538
        %563 = vst [vmem:[%s236 + $0xc] sm:$0xf] %v539
        %564 = vst [vmem:[%s236 + $0x10] sm:$0xf] %v540
        %565 = vst [vmem:[%s236 + $0x14] sm:$0xf] %v541
        %566 = vst [vmem:[%s236 + $0x18] sm:$0xf] %v542
        %567 = vst [vmem:[%s236 + $0x1c] sm:$0xf] %v543
        %568 = vst [vmem:[%s236 + $0x20] sm:$0xf] %v544
        %569 = vst [vmem:[%s236 + $0x24] sm:$0xf] %v545
        %570 = vst [vmem:[%s236 + $0x28] sm:$0xf] %v546
        %571 = vst [vmem:[%s236 + $0x2c] sm:$0xf] %v547
        %s572 = sand.u32 %s121, 1
        %s573 = scalar_lea.sflag [#allocation4], %s572
        %s574 = sand.u32 %s121, 1
        %s575 = smul.addr %s574, 48
        %s576 = scalar_lea.vmem [#allocation7], %s575
        // Predicated region
        $region41: #{tpu_custom_call.1} parent=31 // pred_check
          %p577 = pneg %p131
        $region42: #{tpu_custom_call.1} parent=31 // pred_check_branch
          %579 = sbr.rel (%p577) target = $region44
        $region43: #{tpu_custom_call.1} parent=31 // pred_region
          %s580 = smul.u32 12, %s25
          %s582 = ssub.s32 768, 768
          %583 = vsyncadd %s573, %s582
          %s584 = sadd.s32 %s26, %s580
          %s585 = smul.addr %s584, 64
          %s586 = scalar_lea.hbm %s3, %s585
          %s587 = sshll.u32 %s576, 4
          %s588 = int_to_ptr.vmem [resolvable:$true] %s587
          %593 = dma.vmem_to_hbm [thread:$0]  %s588, 768, %s586, %s573, 64, 64, 4
        $region44: #{tpu_custom_call.1} parent=31 // pred_fallthru
          _
      $region32: #{tpu_custom_call.1} parent=5 // pred_fallthru
        _
      %p594 = scmp.le.s32.totalorder 2, %s16
      // Predicated region
      $region45: #{tpu_custom_call.1} parent=5 // pred_check
        %p595 = pneg %p594
      $region46: #{tpu_custom_call.1} parent=5 // pred_check_branch
        %597 = sbr.rel (%p595) target = $region48
      $region47: #{tpu_custom_call.1} parent=5 // pred_region
        %s598 = ssub.s32 %s16, 2
        // Predicated region
        $region49: #{tpu_custom_call.1} parent=47 // pred_check
          %p599 = pneg %p137
        $region50: #{tpu_custom_call.1} parent=47 // pred_check_branch
          %601 = sbr.rel (%p599) target = $region52
        $region51: #{tpu_custom_call.1} parent=47 // pred_region
          %s602 = sand.u32 %s122, 1
          %s603 = scalar_lea.sflag [#allocation4], %s602
          %s604 = sand.u32 %s122, 1
          %s605 = smul.addr %s604, 48
          %s606 = scalar_lea.vmem [#allocation7], %s605
          %607 = dma.done %s603, 768
        $region52: #{tpu_custom_call.1} parent=47 // pred_fallthru
          _
      $region48: #{tpu_custom_call.1} parent=5 // pred_fallthru
        _
    $region6: #{tpu_custom_call.1} parent=1 // loop_footer
      %s20 = sadd.s32 1, %s16
    $region7: #{tpu_custom_call.1} parent=1 // loop_footer_branch
      %15 = sbr.rel target = $region3
    $region8: #{tpu_custom_call.1} parent=1 // loop_exit
      _
    %608 = vsyncpa [#allocation3], 1
    %s609 = scalar_lea.sflag [#allocation3], 1
    %610 = vsyncpa %s609, 1
    %611 = vsyncpa [#allocation6], 1
    %612 = vsyncpa [#allocation4], 1
    %s613 = scalar_lea.sflag [#allocation4], 1
    %614 = vsyncpa %s613, 1

</llo_original>
